<compile_context>
chip_gen: v7x
topology: tpu7x:2x2x1
jax: 0.10.0
libtpu: 0.0.40
codegen_flags: <defaults>
</compile_context>

<pallas_src>
import functools

import jax
import jax.numpy as jnp
from jax.experimental import pallas as pl
from jax.experimental.pallas import tpu as pltpu

IGNORE_INDEX = -100


def _round_up(x, m):
    return ((x + m - 1) // m) * m


def _pick_tm(n_tokens, tm_req, itemsize):
    """Token-tile size: sublane-aligned, <= N, and >= 2 tiles when possible."""
    sub = {4: 8, 2: 16, 1: 32}.get(itemsize, 8)
    if n_tokens <= sub:
        return int(n_tokens)                      # single block == full array
    tm = max(sub, (min(int(tm_req), n_tokens) // sub) * sub)
    # Megacore balance (v7x has 2 TensorCores sharing the "parallel" axis):
    # guarantee at least 2 token tiles whenever the problem allows it.
    if n_tokens >= 2 * sub:
        half = _round_up(-(-n_tokens // 2), sub)  # round_up(ceil(N/2), sub)
        tm = min(tm, half)
    return tm


def _pick_tv(vocab, tv_req, tm_eff, itemsize):
    """Vocab-tile size: ~8 MiB logits blocks; prefer a tile dividing V."""
    if tv_req is None:
        tv_req = max(512, (8 * 1024 * 1024) // (tm_eff * itemsize))
    if vocab <= tv_req:
        return int(vocab)
    top = max(128, (min(int(tv_req), vocab) // 128) * 128)
    # A tile that divides V exactly statically removes the OOB-vocab mask.
    cand = top
    while cand >= max(128, top // 2):
        if vocab % cand == 0:
            return cand
        cand -= 128
    return top


def _ce_kernel(labels_ref, logits_ref, nll_ref, m_scr, l_scr, ll_scr,
               *, vocab_size, tv, num_v_tiles, mask_oob):
    """Vocab-tiled online log-softmax cross-entropy.

    labels_ref : (TM, 1)  int32  shifted labels for this token tile
    logits_ref : (TM, TV) float  vocab slice of the logits tile
    nll_ref    : (TM, 1)  f32    per-token masked NLL (written at last k)
    m/l/ll_scr : (TM, 1)  f32    running max / exp-sum / label logit,
                                 live across the vocab (k) axis.
    """
    k = pl.program_id(1)

    @pl.when(k == 0)
    def _():
        m_scr[...] = jnp.full(m_scr.shape, -jnp.inf, dtype=jnp.float32)
        l_scr[...] = jnp.zeros(l_scr.shape, dtype=jnp.float32)
        ll_scr[...] = jnp.zeros(ll_scr.shape, dtype=jnp.float32)

    labels = labels_ref[...]                       # (TM, 1) int32
    x = logits_ref[...]                            # (TM, TV) native dtype

    # Tile-local vocab column index (no full-tile "+ k*tv": the offset is
    # folded into the (TM,1) / scalar operands below instead).
    col = jax.lax.broadcasted_iota(jnp.int32, x.shape, 1)

    if mask_oob:
        # Only the last vocab tile has lanes past V; `rem >= tv` elsewhere,
        # so this is a no-op there (scalar bound, 2 VPU ops/element).
        rem = vocab_size - k * tv
        x = jnp.where(col < rem, x, jnp.array(-jnp.inf, dtype=x.dtype))

    # Online logsumexp: max in native dtype, accumulate in f32.
    tile_max = jnp.max(x, axis=-1, keepdims=True).astype(jnp.float32)
    m_new = jnp.maximum(m_scr[...], tile_max)
    alpha = jnp.exp(m_scr[...] - m_new)
    p = jnp.exp(x.astype(jnp.float32) - m_new)
    l_scr[...] = alpha * l_scr[...] + jnp.sum(p, axis=-1, keepdims=True)

    # Label logit via one-hot select (no cross-lane gather on TPU); exact
    # since it is one element plus zeros.  IGNORE_INDEX (-100) never matches.
    hit = jnp.where(col == labels - k * tv, x, jnp.zeros_like(x))
    ll_scr[...] = ll_scr[...] + jnp.sum(hit, axis=-1, keepdims=True).astype(jnp.float32)

    m_scr[...] = m_new

    @pl.when(k == num_v_tiles - 1)
    def _():
        lse = m_scr[...] + jnp.log(l_scr[...])
        valid = labels != IGNORE_INDEX
        # Select (not multiply): stale / garbage rows of a ragged token tile
        # are strictly per-row and cannot NaN-poison real outputs.
        nll_ref[...] = jnp.where(valid, lse - ll_scr[...], 0.0)


@functools.partial(jax.jit, static_argnames=("tm", "tv"))
def gpt_lm_loss(logits, labels, tm=256, tv=None):
    """Forward of GPTLMLoss (non-ring-attention path).

    logits: [B, T, V] float, labels: [B, T] int.
    Returns scalar f32 mean CE over shifted non-ignored tokens.
    (All tokens ignored -> NaN, matching torch CrossEntropyLoss behavior.)
    """
    B, T, V = logits.shape
    N = B * T
    itemsize = jnp.dtype(logits.dtype).itemsize

    # Shift the labels instead of the logits: position t is scored against
    # labels[t+1]; the last position of every sequence is ignored.  The logits
    # reshape is free (contiguous) — no second HBM copy.
    shift_labels = jnp.concatenate(
        [labels[:, 1:], jnp.full((B, 1), IGNORE_INDEX, labels.dtype)], axis=1
    ).astype(jnp.int32).reshape(N)
    flat_logits = logits.reshape(N, V)

    tm_eff = _pick_tm(N, tm, itemsize)
    n_tok_tiles = pl.cdiv(N, tm_eff)
    n_pad = n_tok_tiles * tm_eff
    if n_pad != N:
        # Only the tiny label vector is padded; the ragged tail logits rows
        # are read past the array edge and neutralized via IGNORE_INDEX.
        shift_labels = jnp.pad(shift_labels, ((0, n_pad - N),),
                               constant_values=IGNORE_INDEX)
    shift_labels = shift_labels.reshape(n_pad, 1)

    tv_eff = _pick_tv(V, tv, tm_eff, itemsize)
    n_v_tiles = pl.cdiv(V, tv_eff)
    mask_oob = (n_v_tiles * tv_eff != V)

    kernel = functools.partial(_ce_kernel, vocab_size=V, tv=tv_eff,
                               num_v_tiles=n_v_tiles, mask_oob=mask_oob)

    # VMEM budget: double-buffered logits + labels + output + scratch, with 2x
    # headroom, capped well below v7x's 64 MiB physical VMEM per TensorCore.
    block_bytes = tm_eff * tv_eff * itemsize
    footprint = 2 * (block_bytes + tm_eff * 4 + tm_eff * 4) + 3 * tm_eff * 4
    vmem_limit = int(min(48 * 1024 * 1024, max(16 * 1024 * 1024, 2 * footprint)))

    nll = pl.pallas_call(
        kernel,
        out_shape=jax.ShapeDtypeStruct((n_pad, 1), jnp.float32),
        grid_spec=pltpu.PrefetchScalarGridSpec(
            num_scalar_prefetch=0,
            grid=(n_tok_tiles, n_v_tiles),
            in_specs=[
                # labels: one tiny DMA per token tile (index map ignores k).
                pl.BlockSpec((tm_eff, 1), lambda i, k: (i, 0)),
                # logits: the only large per-step DMA, double-buffered.
                pl.BlockSpec((tm_eff, tv_eff), lambda i, k: (i, k)),
            ],
            out_specs=pl.BlockSpec((tm_eff, 1), lambda i, k: (i, 0)),
            scratch_shapes=[
                pltpu.VMEM((tm_eff, 1), jnp.float32),   # running max
                pltpu.VMEM((tm_eff, 1), jnp.float32),   # running exp-sum
                pltpu.VMEM((tm_eff, 1), jnp.float32),   # label logit
            ],
        ),
        compiler_params=pltpu.CompilerParams(
            dimension_semantics=("parallel", "arbitrary"),
            vmem_limit_bytes=vmem_limit,
        ),
        cost_estimate=pl.CostEstimate(
            flops=6 * N * V,
            transcendentals=N * V,
            bytes_accessed=N * V * itemsize + 2 * n_pad * 4,
        ),
    )(shift_labels, flat_logits)

    valid_cnt = jnp.sum((shift_labels != IGNORE_INDEX).astype(jnp.float32))
    return (jnp.sum(nll) / valid_cnt).astype(jnp.float32)


def _reference_loss(logits, labels):
    """Pure-JAX reference of torch CrossEntropyLoss(ignore_index=-100) on shifted data."""
    B, T, V = logits.shape
    sl = logits[:, :-1, :].reshape(-1, V).astype(jnp.float32)
    tl = labels[:, 1:].reshape(-1)
    log_probs = jax.nn.log_softmax(sl, axis=-1)
    safe_tl = jnp.where(tl == IGNORE_INDEX, 0, tl)
    nll = -jnp.take_along_axis(log_probs, safe_tl[:, None], axis=-1)[:, 0]
    valid = (tl != IGNORE_INDEX).astype(jnp.float32)
    return jnp.sum(nll * valid) / jnp.sum(valid)


if __name__ == "__main__":
    key = jax.random.PRNGKey(0)

    # Case 1: small shapes, default tiling — two token tiles, one vocab tile.
    B, T, V = 2, 8, 128
    k1, k2 = jax.random.split(key)
    logits = jax.random.normal(k1, (B, T, V), dtype=jnp.float32)
    labels = jax.random.randint(k2, (B, T), 0, V, dtype=jnp.int32)
    labels = labels.at[0, 3].set(IGNORE_INDEX).at[1, 5].set(IGNORE_INDEX)

    loss = gpt_lm_loss(logits, labels)
    jax.block_until_ready(loss)
    ref = _reference_loss(logits, labels)
    assert jnp.allclose(loss, ref, atol=1e-5, rtol=1e-5), (loss, ref)

    # Case 2: multiple token tiles with a ragged tail row-block, multiple
    # vocab tiles exercising the OOB-vocab mask path (explicit small tv).
    B2, T2, V2 = 2, 100, 320
    k3, k4 = jax.random.split(k2)
    logits2 = jax.random.normal(k3, (B2, T2, V2), dtype=jnp.float32)
    labels2 = jax.random.randint(k4, (B2, T2), 0, V2, dtype=jnp.int32)
    labels2 = labels2.at[0, 7].set(IGNORE_INDEX).at[1, 11].set(IGNORE_INDEX)

    loss2 = gpt_lm_loss(logits2, labels2, tv=128)
    jax.block_until_ready(loss2)
    ref2 = _reference_loss(logits2, labels2)
    assert jnp.allclose(loss2, ref2, atol=1e-5, rtol=1e-5), (loss2, ref2)

    print("KERNEL_OK")
</pallas_src>

<mosaic_0001>
module attributes {stable_mosaic.version = 11 : i64} {
  func.func @_ce_kernel(%arg0: i32, %arg1: i32, %arg2: memref<8x1xi32, #tpu.memory_space<vmem>>, %arg3: memref<8x128xf32, #tpu.memory_space<vmem>>, %arg4: memref<8x1xf32, #tpu.memory_space<vmem>>, %arg5: memref<8x1xf32, #tpu.memory_space<vmem>>, %arg6: memref<8x1xf32, #tpu.memory_space<vmem>>, %arg7: memref<8x1xf32, #tpu.memory_space<vmem>>) attributes {dimension_semantics = [#tpu.dimension_semantics<parallel>, #tpu.dimension_semantics<arbitrary>], iteration_bounds = array<i64: 2, 1>, scalar_prefetch = 0 : i64, scratch_operands = 3 : i64, tpu.core_type = #tpu.core_type<tc>, window_params = [{transform_indices = @transform_0, window_bounds = array<i64: 8, 1>}, {transform_indices = @transform_1, window_bounds = array<i64: 8, 128>}, {transform_indices = @transform_2, window_bounds = array<i64: 8, 1>}]} {
    %c0_i32 = arith.constant 0 : i32
    %0 = arith.cmpi eq, %arg1, %c0_i32 : i32
    %1 = arith.extui %0 : i1 to i32
    %c0_i32_0 = arith.constant 0 : i32
    %2 = arith.cmpi ne, %1, %c0_i32_0 : i32
    scf.if %2 {
      %cst_23 = arith.constant 0xFF800000 : f32
      %38 = vector.broadcast %cst_23 : f32 to vector<8x1xf32>
      %c0_24 = arith.constant 0 : index
      %c0_25 = arith.constant 0 : index
      %39 = vector.load %arg5[%c0_24, %c0_25] : memref<8x1xf32, #tpu.memory_space<vmem>>, vector<8x1xf32>
      tpu.vector_store %arg5[%c0_24, %c0_25], %38 {strides = array<i32>} : memref<8x1xf32, #tpu.memory_space<vmem>>, vector<8x1xf32>,
      %cst_26 = arith.constant 0.000000e+00 : f32
      %40 = vector.broadcast %cst_26 : f32 to vector<8x1xf32>
      %c0_27 = arith.constant 0 : index
      %c0_28 = arith.constant 0 : index
      %41 = vector.load %arg6[%c0_27, %c0_28] : memref<8x1xf32, #tpu.memory_space<vmem>>, vector<8x1xf32>
      tpu.vector_store %arg6[%c0_27, %c0_28], %40 {strides = array<i32>} : memref<8x1xf32, #tpu.memory_space<vmem>>, vector<8x1xf32>,
      %cst_29 = arith.constant 0.000000e+00 : f32
      %42 = vector.broadcast %cst_29 : f32 to vector<8x1xf32>
      %c0_30 = arith.constant 0 : index
      %c0_31 = arith.constant 0 : index
      %43 = vector.load %arg7[%c0_30, %c0_31] : memref<8x1xf32, #tpu.memory_space<vmem>>, vector<8x1xf32>
      tpu.vector_store %arg7[%c0_30, %c0_31], %42 {strides = array<i32>} : memref<8x1xf32, #tpu.memory_space<vmem>>, vector<8x1xf32>,
    } else {
    }
    %c0 = arith.constant 0 : index
    %c0_1 = arith.constant 0 : index
    %3 = vector.load %arg2[%c0, %c0_1] : memref<8x1xi32, #tpu.memory_space<vmem>>, vector<8x1xi32>
    %c0_2 = arith.constant 0 : index
    %c0_3 = arith.constant 0 : index
    %4 = vector.load %arg3[%c0_2, %c0_3] : memref<8x128xf32, #tpu.memory_space<vmem>>, vector<8x128xf32>
    %5 = tpu.iota {dimensions = array<i32: 1>} : vector<8x128xi32>
    %cst = arith.constant dense<0xFF800000> : vector<8xf32>
    %6 = vector.multi_reduction <maximumf>, %4, %cst [1] : vector<8x128xf32> to vector<8xf32>
    %7 = vector.shape_cast %6 : vector<8xf32> to vector<8x1xf32>
    %c0_4 = arith.constant 0 : index
    %c0_5 = arith.constant 0 : index
    %8 = vector.load %arg5[%c0_4, %c0_5] : memref<8x1xf32, #tpu.memory_space<vmem>>, vector<8x1xf32>
    %9 = arith.maximumf %8, %7 : vector<8x1xf32>
    %c0_6 = arith.constant 0 : index
    %c0_7 = arith.constant 0 : index
    %10 = vector.load %arg5[%c0_6, %c0_7] : memref<8x1xf32, #tpu.memory_space<vmem>>, vector<8x1xf32>
    %11 = arith.subf %10, %9 : vector<8x1xf32>
    %12 = math.exp %11 : vector<8x1xf32>
    %13 = vector.broadcast %9 : vector<8x1xf32> to vector<8x128xf32>
    %14 = arith.subf %4, %13 : vector<8x128xf32>
    %15 = math.exp %14 : vector<8x128xf32>
    %c0_8 = arith.constant 0 : index
    %c0_9 = arith.constant 0 : index
    %16 = vector.load %arg6[%c0_8, %c0_9] : memref<8x1xf32, #tpu.memory_space<vmem>>, vector<8x1xf32>
    %17 = arith.mulf %12, %16 : vector<8x1xf32>
    %cst_10 = arith.constant dense<0.000000e+00> : vector<8xf32>
    %18 = vector.multi_reduction <add>, %15, %cst_10 [1] : vector<8x128xf32> to vector<8xf32>
    %19 = vector.shape_cast %18 : vector<8xf32> to vector<8x1xf32>
    %20 = arith.addf %17, %19 : vector<8x1xf32>
    %c0_11 = arith.constant 0 : index
    %c0_12 = arith.constant 0 : index
    %21 = vector.load %arg6[%c0_11, %c0_12] : memref<8x1xf32, #tpu.memory_space<vmem>>, vector<8x1xf32>
    tpu.vector_store %arg6[%c0_11, %c0_12], %20 {strides = array<i32>} : memref<8x1xf32, #tpu.memory_space<vmem>>, vector<8x1xf32>,
    %c128_i32 = arith.constant 128 : i32
    %22 = arith.muli %arg1, %c128_i32 : i32
    %23 = vector.broadcast %22 : i32 to vector<8x1xi32>
    %24 = arith.subi %3, %23 : vector<8x1xi32>
    %25 = vector.broadcast %24 : vector<8x1xi32> to vector<8x128xi32>
    %26 = arith.cmpi eq, %5, %25 : vector<8x128xi32>
    %cst_13 = arith.constant 0.000000e+00 : f32
    %27 = vector.broadcast %cst_13 : f32 to vector<8x128xf32>
    %28 = arith.select %26, %4, %27 : vector<8x128xi1>, vector<8x128xf32>
    %c0_14 = arith.constant 0 : index
    %c0_15 = arith.constant 0 : index
    %29 = vector.load %arg7[%c0_14, %c0_15] : memref<8x1xf32, #tpu.memory_space<vmem>>, vector<8x1xf32>
    %cst_16 = arith.constant dense<0.000000e+00> : vector<8xf32>
    %30 = vector.multi_reduction <add>, %28, %cst_16 [1] : vector<8x128xf32> to vector<8xf32>
    %31 = vector.shape_cast %30 : vector<8xf32> to vector<8x1xf32>
    %32 = arith.addf %29, %31 : vector<8x1xf32>
    %c0_17 = arith.constant 0 : index
    %c0_18 = arith.constant 0 : index
    %33 = vector.load %arg7[%c0_17, %c0_18] : memref<8x1xf32, #tpu.memory_space<vmem>>, vector<8x1xf32>
    tpu.vector_store %arg7[%c0_17, %c0_18], %32 {strides = array<i32>} : memref<8x1xf32, #tpu.memory_space<vmem>>, vector<8x1xf32>,
    %c0_19 = arith.constant 0 : index
    %c0_20 = arith.constant 0 : index
    %34 = vector.load %arg5[%c0_19, %c0_20] : memref<8x1xf32, #tpu.memory_space<vmem>>, vector<8x1xf32>
    tpu.vector_store %arg5[%c0_19, %c0_20], %9 {strides = array<i32>} : memref<8x1xf32, #tpu.memory_space<vmem>>, vector<8x1xf32>,
    %c0_i32_21 = arith.constant 0 : i32
    %35 = arith.cmpi eq, %arg1, %c0_i32_21 : i32
    %36 = arith.extui %35 : i1 to i32
    %c0_i32_22 = arith.constant 0 : i32
    %37 = arith.cmpi ne, %36, %c0_i32_22 : i32
    scf.if %37 {
      %c0_23 = arith.constant 0 : index
      %c0_24 = arith.constant 0 : index
      %38 = vector.load %arg5[%c0_23, %c0_24] : memref<8x1xf32, #tpu.memory_space<vmem>>, vector<8x1xf32>
      %c0_25 = arith.constant 0 : index
      %c0_26 = arith.constant 0 : index
      %39 = vector.load %arg6[%c0_25, %c0_26] : memref<8x1xf32, #tpu.memory_space<vmem>>, vector<8x1xf32>
      %40 = math.log %39 : vector<8x1xf32>
      %41 = arith.addf %38, %40 : vector<8x1xf32>
      %c-100_i32 = arith.constant -100 : i32
      %42 = vector.broadcast %c-100_i32 : i32 to vector<8x1xi32>
      %43 = arith.cmpi ne, %3, %42 : vector<8x1xi32>
      %c0_27 = arith.constant 0 : index
      %c0_28 = arith.constant 0 : index
      %44 = vector.load %arg7[%c0_27, %c0_28] : memref<8x1xf32, #tpu.memory_space<vmem>>, vector<8x1xf32>
      %45 = arith.subf %41, %44 : vector<8x1xf32>
      %cst_29 = arith.constant 0.000000e+00 : f32
      %46 = vector.broadcast %cst_29 : f32 to vector<8x1xf32>
      %47 = arith.select %43, %45, %46 : vector<8x1xi1>, vector<8x1xf32>
      %c0_30 = arith.constant 0 : index
      %c0_31 = arith.constant 0 : index
      %48 = vector.load %arg4[%c0_30, %c0_31] : memref<8x1xf32, #tpu.memory_space<vmem>>, vector<8x1xf32>
      tpu.vector_store %arg4[%c0_30, %c0_31], %47 {strides = array<i32>} : memref<8x1xf32, #tpu.memory_space<vmem>>, vector<8x1xf32>,
    } else {
    }
    return
  }
  func.func @transform_0(%arg0: i32, %arg1: i32) -> (i32, i32) {
    %c0_i32 = arith.constant 0 : i32
    %c0_i32_0 = arith.constant 0 : i32
    return %arg0, %c0_i32 : i32, i32
  }
  func.func @transform_1(%arg0: i32, %arg1: i32) -> (i32, i32) {
    %c0_i32 = arith.constant 0 : i32
    return %arg0, %arg1 : i32, i32
  }
  func.func @transform_2(%arg0: i32, %arg1: i32) -> (i32, i32) {
    %c0_i32 = arith.constant 0 : i32
    %c0_i32_0 = arith.constant 0 : i32
    return %arg0, %c0_i32 : i32, i32
  }
}

</mosaic_0001>

<llo_original>
// kernel: gpt_lm_loss.1
$region0: #{gpt_lm_loss.1}
  #allocation0 [shape = 'u32[]', space=smem, size = 0x4, offset = 0x4, fixed_abs, tag = 'smem constant byte address 0x4 - core index']
  #allocation1 [shape = 'u32[144,128]{1,0:T(1,128)}', space=vmem, size = 0x12000, scoped, tag = 'internal scratch']
  #allocation2 [shape = 'f32[8,1]{1,0:T(8,128)}', space=vmem, size = 0x1000, scoped, tag = 'scratch operand']
  #allocation3 [shape = 'f32[8,1]{1,0:T(8,128)}', space=vmem, size = 0x1000, scoped, tag = 'scratch operand']
  #allocation4 [shape = 'f32[8,1]{1,0:T(8,128)}', space=vmem, size = 0x1000, scoped, tag = 'scratch operand']
  %s0 = inlined_call_operand.vmem [shape: s32[16,1], index: 0, kind: input, shape index: {}]
  %s1 = inlined_call_operand.vmem [shape: f32[16,128], index: 1, kind: input, shape index: {}]
  %s2 = inlined_call_operand.vmem [shape: f32[16,1], index: 2, kind: output, shape index: {}]
  %s3 = sld [smem:[#allocation0]]
  $region49: #{gpt_lm_loss.1} parent=0
    _
  %s5 = ssub.s32 1, %s3
  %s6 = scalar_select 0, %s5, %s3
  loop: start=0, step=1, limit=4
  $region2: #{gpt_lm_loss.1} parent=0 // loop_pre_header
    _
  $region3: #{gpt_lm_loss.1} parent=0 // loop_header
    %s8 = sphi 0, %s12
    %p9 = scmp.ge.s32.totalorder %s8, 4
    %s15 = sphi 0, %s27
    %s16 = sphi 0, %s23
    %s17 = sphi 0, %s15
    %s18 = sphi 0, %s16
    %s19 = sphi 0, %s17
    %s20 = sphi 0, %s18
    %s30 = sphi 0, %s32
    %s33 = sphi 0, %s30
    %s34 = sphi 0, %s33
    %s50 = sphi 0, %s34
    %s58 = sphi 0, %s60
    %s61 = sphi 0, %s58
    %s62 = sphi 0, %s61
    %s78 = sphi 0, %s62
    %s84 = sphi 0, %s86
    %s87 = sphi 0, %s84
    %s88 = sphi 0, %s87
    %s104 = sphi 0, %s88
  $region4: #{gpt_lm_loss.1} parent=0 // loop_header_branch
    %11 = sbr.rel (%p9) target = $region8
  $region5: #{gpt_lm_loss.1} parent=0 // loop_body
    %s13 = ssub.s32 %s8, 1
    %s14 = ssub.s32 %s8, 2
    %s21 = sadd.s32 1, %s16
    %p22 = scmp.ge.s32.totalorder %s21, 1
    %s23 = scalar_select %p22, 0, %s21
    %s24 = sadd.s32 1, %s15
    %s25 = scalar_select %p22, %s24, %s15
    %p26 = scmp.ge.s32.totalorder %s25, 2
    %s27 = scalar_select %p26, 0, %s25
    %s28 = ssub.s32 %s15, %s27
    %p29 = scmp.eq.s32.totalorder %s28, 0
    %s31 = sadd.s32 %s30, 1
    %s32 = scalar_select %p29, %s30, %s31
    %p35 = pneg %p29
    %p36 = scmp.eq.s32.totalorder %s8, 1
    %p37 = por %p35, %p36
    %p38 = scmp.ne.s32.totalorder %s30, %s33
    %p39 = scmp.eq.s32.totalorder %s8, 0
    %p40 = por %p38, %p39
    %p41 = scmp.ne.s32.totalorder %s30, %s33
    %p42 = scmp.eq.s32.totalorder %s13, 1
    %p43 = por %p41, %p42
    %p44 = scmp.ne.s32.totalorder %s33, %s34
    %p45 = scmp.eq.s32.totalorder %s13, 0
    %p46 = por %p44, %p45
    %p47 = scmp.ne.s32.totalorder %s33, %s34
    %p48 = scmp.eq.s32.totalorder %s14, 1
    %p49 = por %p47, %p48
    %p51 = scmp.ne.s32.totalorder %s34, %s50
    %p52 = scmp.eq.s32.totalorder %s14, 0
    %p53 = por %p51, %p52
    %s54 = ssub.s32 %s15, %s27
    %s55 = ssub.s32 %s16, %s23
    %s56 = sor.u32 %s54, %s55
    %p57 = scmp.eq.s32.totalorder %s56, 0
    %s59 = sadd.s32 %s58, 1
    %s60 = scalar_select %p57, %s58, %s59
    %p63 = pneg %p57
    %p64 = scmp.eq.s32.totalorder %s8, 1
    %p65 = por %p63, %p64
    %p66 = scmp.ne.s32.totalorder %s58, %s61
    %p67 = scmp.eq.s32.totalorder %s8, 0
    %p68 = por %p66, %p67
    %p69 = scmp.ne.s32.totalorder %s58, %s61
    %p70 = scmp.eq.s32.totalorder %s13, 1
    %p71 = por %p69, %p70
    %p72 = scmp.ne.s32.totalorder %s61, %s62
    %p73 = scmp.eq.s32.totalorder %s13, 0
    %p74 = por %p72, %p73
    %p75 = scmp.ne.s32.totalorder %s61, %s62
    %p76 = scmp.eq.s32.totalorder %s14, 1
    %p77 = por %p75, %p76
    %p79 = scmp.ne.s32.totalorder %s62, %s78
    %p80 = scmp.eq.s32.totalorder %s14, 0
    %p81 = por %p79, %p80
    %s82 = ssub.s32 %s15, %s27
    %p83 = scmp.eq.s32.totalorder %s82, 0
    %s85 = sadd.s32 %s84, 1
    %s86 = scalar_select %p83, %s84, %s85
    %p89 = pneg %p83
    %p90 = scmp.eq.s32.totalorder %s8, 1
    %p91 = por %p89, %p90
    %p92 = scmp.ne.s32.totalorder %s84, %s87
    %p93 = scmp.eq.s32.totalorder %s8, 0
    %p94 = por %p92, %p93
    %p95 = scmp.ne.s32.totalorder %s84, %s87
    %p96 = scmp.eq.s32.totalorder %s13, 1
    %p97 = por %p95, %p96
    %p98 = scmp.ne.s32.totalorder %s87, %s88
    %p99 = scmp.eq.s32.totalorder %s13, 0
    %p100 = por %p98, %p99
    %p101 = scmp.ne.s32.totalorder %s87, %s88
    %p102 = scmp.eq.s32.totalorder %s14, 1
    %p103 = por %p101, %p102
    %p105 = scmp.ne.s32.totalorder %s88, %s104
    %p106 = scmp.eq.s32.totalorder %s14, 0
    %p107 = por %p105, %p106
    %p108 = scmp.le.s32.totalorder 1, %s8
    %p109 = scmp.lt.s32.totalorder %s8, 3
    %p110 = pnand %p108, %p109
    %p111 = pneg %p110
    // Predicated region
    $region9: #{gpt_lm_loss.1} parent=5 // pred_check
      _
    $region10: #{gpt_lm_loss.1} parent=5 // pred_check_branch
      %113 = sbr.rel (%p110) target = $region12
    $region11: #{gpt_lm_loss.1} parent=5 // pred_region
      %s114 = ssub.s32 %s8, 1
    $region12: #{gpt_lm_loss.1} parent=5 // pred_fallthru
      _
    %p115 = scmp.lt.s32.totalorder %s8, 2
    // Predicated region
    $region13: #{gpt_lm_loss.1} parent=5 // pred_check
      %p116 = pneg %p115
    $region14: #{gpt_lm_loss.1} parent=5 // pred_check_branch
      %118 = sbr.rel (%p116) target = $region16
    $region15: #{gpt_lm_loss.1} parent=5 // pred_region
      // Predicated region
      $region17: #{gpt_lm_loss.1} parent=15 // pred_check
        %p119 = pneg %p40
      $region18: #{gpt_lm_loss.1} parent=15 // pred_check_branch
        %121 = sbr.rel (%p119) target = $region20
      $region19: #{gpt_lm_loss.1} parent=15 // pred_region
        %p122 = scmp.lt.s32.totalorder %s15, 1
        %s123 = scalar_select %p122, %s15, 1
        %s124 = smul.addr %s123, 8
        %s125 = scalar_lea.vmem %s0, %s124
      $region20: #{gpt_lm_loss.1} parent=15 // pred_fallthru
        _
      // Predicated region
      $region21: #{gpt_lm_loss.1} parent=15 // pred_check
        %p126 = pneg %p68
      $region22: #{gpt_lm_loss.1} parent=15 // pred_check_branch
        %128 = sbr.rel (%p126) target = $region24
      $region23: #{gpt_lm_loss.1} parent=15 // pred_region
        %p129 = scmp.lt.s32.totalorder %s15, 1
        %s130 = scalar_select %p129, %s15, 1
        %p131 = scmp.lt.s32.totalorder %s16, 0
        %s132 = scalar_select %p131, %s16, 0
        %s133 = sadd.s32 %s132, %s130
        %s134 = smul.addr %s133, 8
        %s135 = scalar_lea.vmem %s1, %s134
      $region24: #{gpt_lm_loss.1} parent=15 // pred_fallthru
        _
    $region16: #{gpt_lm_loss.1} parent=5 // pred_fallthru
      _
    %p136 = scmp.le.s32.totalorder 1, %s8
    %p137 = scmp.lt.s32.totalorder %s8, 3
    %p138 = pnand %p136, %p137
    %p139 = pneg %p138
    // Predicated region
    $region25: #{gpt_lm_loss.1} parent=5 // pred_check
      _
    $region26: #{gpt_lm_loss.1} parent=5 // pred_check_branch
      %141 = sbr.rel (%p138) target = $region28
    $region27: #{gpt_lm_loss.1} parent=5 // pred_region
      %s142 = ssub.s32 %s8, 1
      %p143 = scmp.lt.s32.totalorder %s17, 1
      %s144 = scalar_select %p143, %s17, 1
      %s145 = smul.addr %s144, 8
      %s146 = scalar_lea.vmem %s0, %s145
      %p147 = pneg %p46
      %p148 = pneg %p43
      %p149 = scmp.lt.s32.totalorder %s17, 1
      %s150 = scalar_select %p149, %s17, 1
      %p151 = scmp.lt.s32.totalorder %s18, 0
      %s152 = scalar_select %p151, %s18, 0
      %s153 = sadd.s32 %s152, %s150
      %s154 = smul.addr %s153, 8
      %s155 = scalar_lea.vmem %s1, %s154
      %p156 = pneg %p74
      %p157 = pneg %p71
      %p158 = pneg %p100
      %p159 = pneg %p97
      %p160 = scmp.lt.s32.totalorder %s17, 1
      %s161 = scalar_select %p160, %s17, 1
      %s162 = smul.addr %s161, 8
      %s163 = scalar_lea.vmem %s2, %s162
      %p164 = scmp.lt.s32.totalorder %s17, 1
      %s165 = scalar_select %p164, %s17, 1
      %s166 = smul.addr %s165, 8
      %s167 = scalar_lea.vmem %s0, %s166
      %p168 = scmp.lt.s32.totalorder %s17, 1
      %s169 = scalar_select %p168, %s17, 1
      %p170 = scmp.lt.s32.totalorder %s18, 0
      %s171 = scalar_select %p170, %s18, 0
      %s172 = sadd.s32 %s171, %s169
      %s173 = smul.addr %s172, 8
      %s174 = scalar_lea.vmem %s1, %s173
      %p175 = scmp.lt.s32.totalorder %s17, 1
      %s176 = scalar_select %p175, %s17, 1
      %s177 = smul.addr %s176, 8
      %s178 = scalar_lea.vmem %s2, %s177
      %p179 = scmp.eq.s32.totalorder %s18, 0
      // Predicated region
      $region29: #{gpt_lm_loss.1} parent=27 // pred_check
        %p180 = pneg %p179
      $region30: #{gpt_lm_loss.1} parent=27 // pred_check_branch
        %182 = sbr.rel (%p180) target = $region32
      $region31: #{gpt_lm_loss.1} parent=27 // pred_region
        %vm183 = vcmask 7168
        %184 = vst.msk [vmem:[#allocation2] sm:$0xff] %vm183, -inf
        %185 = vst.msk [vmem:[#allocation3] sm:$0xff] %vm183, 0.0
        %186 = vst.msk [vmem:[#allocation4] sm:$0xff] %vm183, 0.0
      $region32: #{gpt_lm_loss.1} parent=27 // pred_fallthru
        _
      %v187 = vld [vmem:[%s167] sm:$0xff]
      %v188 = vld [vmem:[%s174] sm:$0xff]
      %v189 = vlaneseq
      %v190 = vand.u32 %v189, 127
      %191 = vmax.xlane.f32.xlu0 %v188
      %v192 = vpop.xlane.xlu0 %191
      %v193 = vld [vmem:[#allocation2] sm:$0xff]
      %v194 = vmax.f32 %v193, %v192
      %v195 = vsub.f32 %v193, %v194
      %v196 = vmul.f32 %v195, 1.442695
      %v197 = vpow.pop %v196
      %199 = vset.pattern.permute.xlu0 0
      %200 = vperm.xlu0 %199, %v194
      %v201 = vpop.permute.xlu0 %200
      %v203 = vsub.f32 %v188, %v201
      %v204 = vmul.f32 %v203, 1.442695
      %v205 = vpow.pop %v204
      %v206 = vld [vmem:[#allocation3] sm:$0xff]
      %v207 = vmul.f32 %v197, %v206
      %208 = vadd.xlane.f32.xlu0 %v205
      %v209 = vpop.xlane.xlu0 %208
      %v210 = vadd.f32 %v207, %v209
      %vm211 = vcmask 7168
      %212 = vst.msk [vmem:[#allocation3] sm:$0xff] %vm211, %v210
      %s213 = smul.u32 %s18, 128
      %v214 = vstv %s213
      %v215 = vsub.s32 %v187, %v214
      %216 = vset.pattern.permute.xlu0 0
      %217 = vperm.xlu0 %216, %v215
      %v218 = vpop.permute.xlu0 %217
      %vm219 = vcmp.eq.s32.totalorder %v190, %v218
      %v220 = vsel %vm219, %v188, 0.0
      %v221 = vld [vmem:[#allocation4] sm:$0xff]
      %222 = vadd.xlane.f32.xlu0 %v220
      %v223 = vpop.xlane.xlu0 %222
      %v224 = vadd.f32 %v221, %v223
      %225 = vst.msk [vmem:[#allocation4] sm:$0xff] %vm211, %v224
      %226 = vst.msk [vmem:[#allocation2] sm:$0xff] %vm211, %v194
      // Predicated region
      $region33: #{gpt_lm_loss.1} parent=27 // pred_check
        %p227 = pneg %p179
      $region34: #{gpt_lm_loss.1} parent=27 // pred_check_branch
        %229 = sbr.rel (%p227) target = $region36
      $region35: #{gpt_lm_loss.1} parent=27 // pred_region
        %v230 = vld [vmem:[#allocation2] sm:$0xff]
        %v231 = vld [vmem:[#allocation3] sm:$0xff]
        %v232 = vlog2.pop %v231
        %v233 = vmul.f32 %v232, 0.6931472
        %v234 = vadd.f32 %v230, %v233
        %vm235 = vcmp.ne.s32.totalorder %v187, 4294967196
        %v236 = vld [vmem:[#allocation4] sm:$0xff]
        %v237 = vsub.f32 %v234, %v236
        %v238 = vsel %vm235, %v237, 0.0
        %239 = vst.msk [vmem:[%s178] sm:$0xff] %vm211, %v238
      $region36: #{gpt_lm_loss.1} parent=27 // pred_fallthru
        _
      %p240 = scmp.lt.s32.totalorder %s17, 1
      %s241 = scalar_select %p240, %s17, 1
      %s242 = smul.addr %s241, 8
      %s243 = scalar_lea.vmem %s2, %s242
      // Predicated region
      $region37: #{gpt_lm_loss.1} parent=27 // pred_check
        %p244 = pneg %p97
      $region38: #{gpt_lm_loss.1} parent=27 // pred_check_branch
        %246 = sbr.rel (%p244) target = $region40
      $region39: #{gpt_lm_loss.1} parent=27 // pred_region
        _
      $region40: #{gpt_lm_loss.1} parent=27 // pred_fallthru
        _
    $region28: #{gpt_lm_loss.1} parent=5 // pred_fallthru
      _
    %p247 = scmp.le.s32.totalorder 2, %s8
    // Predicated region
    $region41: #{gpt_lm_loss.1} parent=5 // pred_check
      %p248 = pneg %p247
    $region42: #{gpt_lm_loss.1} parent=5 // pred_check_branch
      %250 = sbr.rel (%p248) target = $region44
    $region43: #{gpt_lm_loss.1} parent=5 // pred_region
      %s251 = ssub.s32 %s8, 2
      // Predicated region
      $region45: #{gpt_lm_loss.1} parent=43 // pred_check
        %p252 = pneg %p103
      $region46: #{gpt_lm_loss.1} parent=43 // pred_check_branch
        %254 = sbr.rel (%p252) target = $region48
      $region47: #{gpt_lm_loss.1} parent=43 // pred_region
        %p255 = scmp.lt.s32.totalorder %s19, 1
        %s256 = scalar_select %p255, %s19, 1
        %s257 = smul.addr %s256, 8
        %s258 = scalar_lea.vmem %s2, %s257
      $region48: #{gpt_lm_loss.1} parent=43 // pred_fallthru
        _
    $region44: #{gpt_lm_loss.1} parent=5 // pred_fallthru
      _
  $region6: #{gpt_lm_loss.1} parent=0 // loop_footer
    %s12 = sadd.s32 1, %s8
  $region7: #{gpt_lm_loss.1} parent=0 // loop_footer_branch
    %7 = sbr.rel target = $region3
  $region8: #{gpt_lm_loss.1} parent=0 // loop_exit
    _

</llo_original>
